<compile_context>
chip_gen: v5e
topology: v5e:2x2
jax: 0.10.0
libtpu: 0.0.40
codegen_flags: <defaults>
</compile_context>

<pallas_src>
import jax
import jax.numpy as jnp
from jax.experimental import pallas as pl
from jax.experimental.pallas import tpu as pltpu


# Packed parameter layout inside a (16, 128) f32 buffer (all slices start at row 0):
#   W1 (10,2) -> cols 0:2   | b1 (10,1) -> col 2
#   W2 (10,10)-> cols 3:13  | b2 (10,1) -> col 13
#   W3^T(10,1)-> col 14     | b3 (1,1)  -> col 15 (row 0)
_P_ROWS, _P_COLS = 16, 128


def bpnn_kernel(x_ref, p_ref, o_ref):
    p = p_ref[...]                                   # (16, 128): 2 vregs, resident
    xt = x_ref[...]                                  # (2, TB), batch on lanes

    # Layer 1 (2 -> 10): two broadcast FMAs (VPU), bias folded in.
    h1 = (p[0:10, 0:1] * xt[0:1, :]
          + p[0:10, 1:2] * xt[1:2, :]
          + p[0:10, 2:3])
    h1 = jnp.maximum(h1, 0.0)                        # (10, TB)

    # Layer 2 (10 -> 10): ten broadcast FMAs, unrolled at trace time (VPU).
    acc = p[0:10, 3:4] * h1[0:1, :]
    for k in range(1, 10):
        acc = acc + p[0:10, 3 + k:4 + k] * h1[k:k + 1, :]
    h2 = jnp.maximum(acc + p[0:10, 13:14], 0.0)      # (10, TB)

    # Layer 3 (10 -> 1): elementwise scale + cross-sublane reduce (XLU) + bias.
    out = jnp.sum(p[0:10, 14:15] * h2, axis=0, keepdims=True) + p[0:1, 15:16]
    o_ref[...] = out.astype(o_ref.dtype)             # (1, TB), lane-dense store


def pack_params(params):
    """Pack PyTorch-layout params (W:(out,in), b:(out,)) into one (16,128) buffer."""
    w1, b1, w2, b2, w3, b3 = params
    p = jnp.zeros((_P_ROWS, _P_COLS), jnp.float32)
    p = p.at[0:10, 0:2].set(w1)
    p = p.at[0:10, 2:3].set(b1.reshape(10, 1))
    p = p.at[0:10, 3:13].set(w2)
    p = p.at[0:10, 13:14].set(b2.reshape(10, 1))
    p = p.at[0:10, 14:15].set(w3.reshape(1, 10).T)
    p = p.at[0:1, 15:16].set(b3.reshape(1, 1))
    return p


def bpnn_forward(x, packed_params, *, batch_tile=None):
    """x: (B, 2) f32 -> (B, 1) f32, equivalent to BPNN.forward."""
    B = x.shape[0]
    if batch_tile is None:
        # Lane-dense tile (multiple of 128). Cap keeps double-buffered x/out
        # tiles + resident params at a few tens of KiB — far under the 64 MiB
        # v7x / 128 MiB v5e-v6e VMEM and the default scoped limits.
        batch_tile = min(1024, max(128, pl.cdiv(B, 128) * 128))
    b_pad = pl.cdiv(B, batch_tile) * batch_tile

    # Transpose so batch is the last (lane) axis; zero-pad to the tile grid.
    xt = jnp.zeros((2, b_pad), jnp.float32).at[:, :B].set(x.astype(jnp.float32).T)

    out_t = pl.pallas_call(
        bpnn_kernel,
        out_shape=jax.ShapeDtypeStruct((1, b_pad), jnp.float32),
        grid=(b_pad // batch_tile,),
        in_specs=[
            pl.BlockSpec((2, batch_tile), lambda i: (0, i)),        # x^T tiles (pipelined)
            pl.BlockSpec((_P_ROWS, _P_COLS), lambda i: (0, 0)),     # params stay resident
        ],
        out_specs=pl.BlockSpec((1, batch_tile), lambda i: (0, i)),
        compiler_params=pltpu.CompilerParams(
            dimension_semantics=("parallel",)),                     # shard batch on v7x's 2 TCs
    )(xt, packed_params)

    return out_t[:, :B].T                                           # (B, 1)


def init_params(key):
    # nn.Linear default init: U(-1/sqrt(fan_in), 1/sqrt(fan_in)); W stored (out, in).
    def linear(k, fan_in, fan_out):
        kw, kb = jax.random.split(k)
        bound = 1.0 / (fan_in ** 0.5)
        w = jax.random.uniform(kw, (fan_out, fan_in), jnp.float32, -bound, bound)
        b = jax.random.uniform(kb, (fan_out,), jnp.float32, -bound, bound)
        return w, b

    k1, k2, k3 = jax.random.split(key, 3)
    w1, b1 = linear(k1, 2, 10)
    w2, b2 = linear(k2, 10, 10)
    w3, b3 = linear(k3, 10, 1)
    return (w1, b1, w2, b2, w3, b3)


def bpnn_reference(x, params):
    w1, b1, w2, b2, w3, b3 = params
    hp = jax.lax.Precision.HIGHEST
    h = jnp.maximum(jnp.dot(x, w1.T, precision=hp) + b1, 0.0)
    h = jnp.maximum(jnp.dot(h, w2.T, precision=hp) + b2, 0.0)
    return jnp.dot(h, w3.T, precision=hp) + b3


if __name__ == "__main__":
    key = jax.random.PRNGKey(0)
    kx, kp = jax.random.split(key)

    B = 8
    x = jax.random.normal(kx, (B, 2), jnp.float32)
    params = init_params(kp)
    packed = pack_params(params)

    out = bpnn_forward(x, packed)
    jax.block_until_ready(out)

    ref = bpnn_reference(x, params)
    assert out.shape == (B, 1), out.shape
    assert jnp.allclose(out, ref, atol=1e-5, rtol=1e-5), float(jnp.max(jnp.abs(out - ref)))
    print("KERNEL_OK")
</pallas_src>

<mosaic_0001>
module attributes {stable_mosaic.version = 11 : i64} {
  func.func @bpnn_kernel(%arg0: i32, %arg1: memref<2x128xf32, #tpu.memory_space<vmem>>, %arg2: memref<16x128xf32, #tpu.memory_space<vmem>>, %arg3: memref<1x128xf32, #tpu.memory_space<vmem>>) attributes {dimension_semantics = [#tpu.dimension_semantics<parallel>], iteration_bounds = array<i64: 1>, scalar_prefetch = 0 : i64, scratch_operands = 0 : i64, tpu.core_type = #tpu.core_type<tc>, window_params = [{transform_indices = @transform_0, window_bounds = array<i64: 2, 128>}, {pipeline_mode = #tpu.pipeline_mode<synchronous>, transform_indices = @transform_1, window_bounds = array<i64: 16, 128>}, {transform_indices = @transform_2, window_bounds = array<i64: 1, 128>}]} {
    %c0 = arith.constant 0 : index
    %c0_0 = arith.constant 0 : index
    %0 = vector.load %arg2[%c0, %c0_0] : memref<16x128xf32, #tpu.memory_space<vmem>>, vector<16x128xf32>
    %c0_1 = arith.constant 0 : index
    %c0_2 = arith.constant 0 : index
    %1 = vector.load %arg1[%c0_1, %c0_2] : memref<2x128xf32, #tpu.memory_space<vmem>>, vector<2x128xf32>
    %2 = vector.extract_strided_slice %0 {offsets = [0, 0], sizes = [10, 1], strides = [1, 1]} : vector<16x128xf32> to vector<10x1xf32>
    %3 = vector.extract_strided_slice %1 {offsets = [0, 0], sizes = [1, 128], strides = [1, 1]} : vector<2x128xf32> to vector<1x128xf32>
    %4 = vector.broadcast %2 : vector<10x1xf32> to vector<10x128xf32>
    %5 = vector.broadcast %3 : vector<1x128xf32> to vector<10x128xf32>
    %6 = arith.mulf %4, %5 : vector<10x128xf32>
    %7 = vector.extract_strided_slice %0 {offsets = [0, 1], sizes = [10, 1], strides = [1, 1]} : vector<16x128xf32> to vector<10x1xf32>
    %8 = vector.extract_strided_slice %1 {offsets = [1, 0], sizes = [1, 128], strides = [1, 1]} : vector<2x128xf32> to vector<1x128xf32>
    %9 = vector.broadcast %7 : vector<10x1xf32> to vector<10x128xf32>
    %10 = vector.broadcast %8 : vector<1x128xf32> to vector<10x128xf32>
    %11 = arith.mulf %9, %10 : vector<10x128xf32>
    %12 = arith.addf %6, %11 : vector<10x128xf32>
    %13 = vector.extract_strided_slice %0 {offsets = [0, 2], sizes = [10, 1], strides = [1, 1]} : vector<16x128xf32> to vector<10x1xf32>
    %14 = vector.broadcast %13 : vector<10x1xf32> to vector<10x128xf32>
    %15 = arith.addf %12, %14 : vector<10x128xf32>
    %cst = arith.constant 0.000000e+00 : f32
    %16 = vector.broadcast %cst : f32 to vector<10x128xf32>
    %17 = arith.maximumf %15, %16 : vector<10x128xf32>
    %18 = vector.extract_strided_slice %0 {offsets = [0, 3], sizes = [10, 1], strides = [1, 1]} : vector<16x128xf32> to vector<10x1xf32>
    %19 = vector.extract_strided_slice %17 {offsets = [0, 0], sizes = [1, 128], strides = [1, 1]} : vector<10x128xf32> to vector<1x128xf32>
    %20 = vector.broadcast %18 : vector<10x1xf32> to vector<10x128xf32>
    %21 = vector.broadcast %19 : vector<1x128xf32> to vector<10x128xf32>
    %22 = arith.mulf %20, %21 : vector<10x128xf32>
    %23 = vector.extract_strided_slice %0 {offsets = [0, 4], sizes = [10, 1], strides = [1, 1]} : vector<16x128xf32> to vector<10x1xf32>
    %24 = vector.extract_strided_slice %17 {offsets = [1, 0], sizes = [1, 128], strides = [1, 1]} : vector<10x128xf32> to vector<1x128xf32>
    %25 = vector.broadcast %23 : vector<10x1xf32> to vector<10x128xf32>
    %26 = vector.broadcast %24 : vector<1x128xf32> to vector<10x128xf32>
    %27 = arith.mulf %25, %26 : vector<10x128xf32>
    %28 = arith.addf %22, %27 : vector<10x128xf32>
    %29 = vector.extract_strided_slice %0 {offsets = [0, 5], sizes = [10, 1], strides = [1, 1]} : vector<16x128xf32> to vector<10x1xf32>
    %30 = vector.extract_strided_slice %17 {offsets = [2, 0], sizes = [1, 128], strides = [1, 1]} : vector<10x128xf32> to vector<1x128xf32>
    %31 = vector.broadcast %29 : vector<10x1xf32> to vector<10x128xf32>
    %32 = vector.broadcast %30 : vector<1x128xf32> to vector<10x128xf32>
    %33 = arith.mulf %31, %32 : vector<10x128xf32>
    %34 = arith.addf %28, %33 : vector<10x128xf32>
    %35 = vector.extract_strided_slice %0 {offsets = [0, 6], sizes = [10, 1], strides = [1, 1]} : vector<16x128xf32> to vector<10x1xf32>
    %36 = vector.extract_strided_slice %17 {offsets = [3, 0], sizes = [1, 128], strides = [1, 1]} : vector<10x128xf32> to vector<1x128xf32>
    %37 = vector.broadcast %35 : vector<10x1xf32> to vector<10x128xf32>
    %38 = vector.broadcast %36 : vector<1x128xf32> to vector<10x128xf32>
    %39 = arith.mulf %37, %38 : vector<10x128xf32>
    %40 = arith.addf %34, %39 : vector<10x128xf32>
    %41 = vector.extract_strided_slice %0 {offsets = [0, 7], sizes = [10, 1], strides = [1, 1]} : vector<16x128xf32> to vector<10x1xf32>
    %42 = vector.extract_strided_slice %17 {offsets = [4, 0], sizes = [1, 128], strides = [1, 1]} : vector<10x128xf32> to vector<1x128xf32>
    %43 = vector.broadcast %41 : vector<10x1xf32> to vector<10x128xf32>
    %44 = vector.broadcast %42 : vector<1x128xf32> to vector<10x128xf32>
    %45 = arith.mulf %43, %44 : vector<10x128xf32>
    %46 = arith.addf %40, %45 : vector<10x128xf32>
    %47 = vector.extract_strided_slice %0 {offsets = [0, 8], sizes = [10, 1], strides = [1, 1]} : vector<16x128xf32> to vector<10x1xf32>
    %48 = vector.extract_strided_slice %17 {offsets = [5, 0], sizes = [1, 128], strides = [1, 1]} : vector<10x128xf32> to vector<1x128xf32>
    %49 = vector.broadcast %47 : vector<10x1xf32> to vector<10x128xf32>
    %50 = vector.broadcast %48 : vector<1x128xf32> to vector<10x128xf32>
    %51 = arith.mulf %49, %50 : vector<10x128xf32>
    %52 = arith.addf %46, %51 : vector<10x128xf32>
    %53 = vector.extract_strided_slice %0 {offsets = [0, 9], sizes = [10, 1], strides = [1, 1]} : vector<16x128xf32> to vector<10x1xf32>
    %54 = vector.extract_strided_slice %17 {offsets = [6, 0], sizes = [1, 128], strides = [1, 1]} : vector<10x128xf32> to vector<1x128xf32>
    %55 = vector.broadcast %53 : vector<10x1xf32> to vector<10x128xf32>
    %56 = vector.broadcast %54 : vector<1x128xf32> to vector<10x128xf32>
    %57 = arith.mulf %55, %56 : vector<10x128xf32>
    %58 = arith.addf %52, %57 : vector<10x128xf32>
    %59 = vector.extract_strided_slice %0 {offsets = [0, 10], sizes = [10, 1], strides = [1, 1]} : vector<16x128xf32> to vector<10x1xf32>
    %60 = vector.extract_strided_slice %17 {offsets = [7, 0], sizes = [1, 128], strides = [1, 1]} : vector<10x128xf32> to vector<1x128xf32>
    %61 = vector.broadcast %59 : vector<10x1xf32> to vector<10x128xf32>
    %62 = vector.broadcast %60 : vector<1x128xf32> to vector<10x128xf32>
    %63 = arith.mulf %61, %62 : vector<10x128xf32>
    %64 = arith.addf %58, %63 : vector<10x128xf32>
    %65 = vector.extract_strided_slice %0 {offsets = [0, 11], sizes = [10, 1], strides = [1, 1]} : vector<16x128xf32> to vector<10x1xf32>
    %66 = vector.extract_strided_slice %17 {offsets = [8, 0], sizes = [1, 128], strides = [1, 1]} : vector<10x128xf32> to vector<1x128xf32>
    %67 = vector.broadcast %65 : vector<10x1xf32> to vector<10x128xf32>
    %68 = vector.broadcast %66 : vector<1x128xf32> to vector<10x128xf32>
    %69 = arith.mulf %67, %68 : vector<10x128xf32>
    %70 = arith.addf %64, %69 : vector<10x128xf32>
    %71 = vector.extract_strided_slice %0 {offsets = [0, 12], sizes = [10, 1], strides = [1, 1]} : vector<16x128xf32> to vector<10x1xf32>
    %72 = vector.extract_strided_slice %17 {offsets = [9, 0], sizes = [1, 128], strides = [1, 1]} : vector<10x128xf32> to vector<1x128xf32>
    %73 = vector.broadcast %71 : vector<10x1xf32> to vector<10x128xf32>
    %74 = vector.broadcast %72 : vector<1x128xf32> to vector<10x128xf32>
    %75 = arith.mulf %73, %74 : vector<10x128xf32>
    %76 = arith.addf %70, %75 : vector<10x128xf32>
    %77 = vector.extract_strided_slice %0 {offsets = [0, 13], sizes = [10, 1], strides = [1, 1]} : vector<16x128xf32> to vector<10x1xf32>
    %78 = vector.broadcast %77 : vector<10x1xf32> to vector<10x128xf32>
    %79 = arith.addf %76, %78 : vector<10x128xf32>
    %cst_3 = arith.constant 0.000000e+00 : f32
    %80 = vector.broadcast %cst_3 : f32 to vector<10x128xf32>
    %81 = arith.maximumf %79, %80 : vector<10x128xf32>
    %82 = vector.extract_strided_slice %0 {offsets = [0, 14], sizes = [10, 1], strides = [1, 1]} : vector<16x128xf32> to vector<10x1xf32>
    %83 = vector.broadcast %82 : vector<10x1xf32> to vector<10x128xf32>
    %84 = arith.mulf %83, %81 : vector<10x128xf32>
    %cst_4 = arith.constant dense<0.000000e+00> : vector<128xf32>
    %85 = vector.multi_reduction <add>, %84, %cst_4 [0] : vector<10x128xf32> to vector<128xf32>
    %86 = vector.shape_cast %85 : vector<128xf32> to vector<1x128xf32>
    %87 = vector.extract_strided_slice %0 {offsets = [0, 15], sizes = [1, 1], strides = [1, 1]} : vector<16x128xf32> to vector<1x1xf32>
    %88 = vector.broadcast %87 : vector<1x1xf32> to vector<1x128xf32>
    %89 = arith.addf %86, %88 : vector<1x128xf32>
    %c0_5 = arith.constant 0 : index
    %c0_6 = arith.constant 0 : index
    %90 = vector.load %arg3[%c0_5, %c0_6] : memref<1x128xf32, #tpu.memory_space<vmem>>, vector<1x128xf32>
    tpu.vector_store %arg3[%c0_5, %c0_6], %89 {strides = array<i32>} : memref<1x128xf32, #tpu.memory_space<vmem>>, vector<1x128xf32>,
    return
  }
  func.func @transform_0(%arg0: i32) -> (i32, i32) {
    %c0_i32 = arith.constant 0 : i32
    %c0_i32_0 = arith.constant 0 : i32
    return %c0_i32, %arg0 : i32, i32
  }
  func.func @transform_1(%arg0: i32) -> (i32, i32) {
    %c0_i32 = arith.constant 0 : i32
    %c0_i32_0 = arith.constant 0 : i32
    %c0_i32_1 = arith.constant 0 : i32
    return %c0_i32, %c0_i32_0 : i32, i32
  }
  func.func @transform_2(%arg0: i32) -> (i32, i32) {
    %c0_i32 = arith.constant 0 : i32
    %c0_i32_0 = arith.constant 0 : i32
    return %c0_i32, %arg0 : i32, i32
  }
}

</mosaic_0001>

<llo_original>
// kernel: tpu_custom_call.1
$region0: #{tpu_custom_call.1}
  #allocation0 [shape = 'u32[]', space=smem, size = 0x4, offset = 0x4, fixed_abs, tag = 'smem constant byte address 0x4 - core index']
  #allocation1 [shape = 'u32[72,128]{1,0:T(1,128)}', space=vmem, size = 0x9000, scoped, tag = 'internal scratch']
  %s0 = inlined_call_operand.hbm [shape: f32[2,128], index: 0, kind: input, shape index: {}]
  %s1 = inlined_call_operand.hbm [shape: f32[16,128], index: 1, kind: input, shape index: {}]
  %s2 = inlined_call_operand.hbm [shape: f32[1,128], index: 2, kind: output, shape index: {}]
  %s3 = sld [smem:[#allocation0]]
  $region26: #{tpu_custom_call.1} parent=0
    _
  %s5 = ssub.s32 1, %s3
  %s6 = scalar_select 0, %s5, %s3
  $region1: #{tpu_custom_call.1} parent=0
    #allocation2 [shape = 'u8[1024]{0}', space=vmem, size = 0x400, scoped, tag = 'input window, operand 0, single buffered']
    #allocation3 [shape = 's32[1]{0}', space=sflag, size = 0x4, scoped, tag = 'scoped memory for tpu_custom_call.1']
    #allocation4 [shape = 's32[1]{0}', space=sflag, size = 0x4, scoped, tag = 'scoped memory for tpu_custom_call.1']
    #allocation5 [shape = 'u8[8192]{0}', space=vmem, size = 0x2000, scoped, tag = 'input window, operand 1, single buffered']
    #allocation6 [shape = 's32[1]{0}', space=sflag, size = 0x4, scoped, tag = 'scoped memory for tpu_custom_call.1']
    #allocation7 [shape = 'u8[512]{0}', space=vmem, size = 0x400, scoped, tag = 'output window, operand 0, single buffered']
    %7 = vsyncpa [#allocation3], 0
    %8 = vsyncpa [#allocation6], 0
    %9 = vsyncpa [#allocation4], 0
    // Predicated region
    $region2: #{tpu_custom_call.1} parent=1 // pred_check
      _
    $region3: #{tpu_custom_call.1} parent=1 // pred_check_branch
      %11 = sbr.rel (0) target = $region5
    $region4: #{tpu_custom_call.1} parent=1 // pred_region
      %13 = vsyncadd [#allocation3], 0
      %s15 = sshll.u32 %s0, 4
      %s16 = int_to_ptr.hbm [resolvable:$true] %s15
      %s17 = sshll.u32 [#allocation2], 4
      %s18 = int_to_ptr.vmem [resolvable:$true] %s17
      %20 = dma.hbm_to_vmem [thread:$0]  %s16, 32, %s18, [#allocation3]
    $region5: #{tpu_custom_call.1} parent=1 // pred_fallthru
      _
    // Predicated region
    $region6: #{tpu_custom_call.1} parent=1 // pred_check
      _
    $region7: #{tpu_custom_call.1} parent=1 // pred_check_branch
      %22 = sbr.rel (0) target = $region9
    $region8: #{tpu_custom_call.1} parent=1 // pred_region
      %24 = vsyncadd [#allocation6], 0
      %s25 = sshll.u32 %s1, 4
      %s26 = int_to_ptr.hbm [resolvable:$true] %s25
      %s27 = sshll.u32 [#allocation5], 4
      %s28 = int_to_ptr.vmem [resolvable:$true] %s27
      %33 = dma.hbm_to_vmem [thread:$0]  %s26, 256, %s28, [#allocation6], 128, 128, 8
    $region9: #{tpu_custom_call.1} parent=1 // pred_fallthru
      _
    // Predicated region
    $region10: #{tpu_custom_call.1} parent=1 // pred_check
      _
    $region11: #{tpu_custom_call.1} parent=1 // pred_check_branch
      %35 = sbr.rel (0) target = $region13
    $region12: #{tpu_custom_call.1} parent=1 // pred_region
      %37 = dma.done [#allocation3], 32
    $region13: #{tpu_custom_call.1} parent=1 // pred_fallthru
      _
    // Predicated region
    $region14: #{tpu_custom_call.1} parent=1 // pred_check
      _
    $region15: #{tpu_custom_call.1} parent=1 // pred_check_branch
      %39 = sbr.rel (0) target = $region17
    $region16: #{tpu_custom_call.1} parent=1 // pred_region
      %41 = dma.done [#allocation6], 256
    $region17: #{tpu_custom_call.1} parent=1 // pred_fallthru
      _
    %v42 = vld [vmem:[#allocation5] sm:$0xff]
    %v43 = vld [vmem:[#allocation5 + $0x8] sm:$0xff]
    %v44 = vld [vmem:[#allocation2] sm:$0x3]
    %46 = vset.pattern.permute.xlu0 0
    %47 = vperm.xlu0 %46, %v42
    %v48 = vpop.permute.xlu0 %47
    %51 = vset.pattern.permute.xlu0 0
    %52 = vperm.xlu0 %51, %v43
    %v53 = vpop.permute.xlu0 %52
    %v55 = vperm.slane %v44, 0
    %v56 = vmul.f32 %v48, %v55
    %v57 = vmul.f32 %v53, %v55
    %58 = vset.pattern.permute.xlu0 1
    %59 = vperm.xlu0 %58, %v42
    %v60 = vpop.permute.xlu0 %59
    %62 = vset.pattern.permute.xlu0 1
    %63 = vperm.xlu0 %62, %v43
    %v64 = vpop.permute.xlu0 %63
    %v66 = vperm.slane %v44, 1
    %v67 = vmul.f32 %v60, %v66
    %v68 = vmul.f32 %v64, %v66
    %v69 = vadd.f32 %v56, %v67
    %v70 = vadd.f32 %v57, %v68
    %71 = vset.pattern.permute.xlu0 2
    %72 = vperm.xlu0 %71, %v42
    %v73 = vpop.permute.xlu0 %72
    %75 = vset.pattern.permute.xlu0 2
    %76 = vperm.xlu0 %75, %v43
    %v77 = vpop.permute.xlu0 %76
    %v79 = vadd.f32 %v69, %v73
    %v80 = vadd.f32 %v70, %v77
    %v81 = vmax.f32 %v79, 0.0
    %v82 = vmax.f32 %v80, 0.0
    %83 = vset.pattern.permute.xlu0 3
    %84 = vperm.xlu0 %83, %v42
    %v85 = vpop.permute.xlu0 %84
    %87 = vset.pattern.permute.xlu0 3
    %88 = vperm.xlu0 %87, %v43
    %v89 = vpop.permute.xlu0 %88
    %v91 = vperm.slane %v81, 0
    %v92 = vmul.f32 %v85, %v91
    %v93 = vmul.f32 %v89, %v91
    %94 = vset.pattern.permute.xlu0 4
    %95 = vperm.xlu0 %94, %v42
    %v96 = vpop.permute.xlu0 %95
    %98 = vset.pattern.permute.xlu0 4
    %99 = vperm.xlu0 %98, %v43
    %v100 = vpop.permute.xlu0 %99
    %v102 = vperm.slane %v81, 1
    %v103 = vmul.f32 %v96, %v102
    %v104 = vmul.f32 %v100, %v102
    %v105 = vadd.f32 %v92, %v103
    %v106 = vadd.f32 %v93, %v104
    %107 = vset.pattern.permute.xlu0 5
    %108 = vperm.xlu0 %107, %v42
    %v109 = vpop.permute.xlu0 %108
    %111 = vset.pattern.permute.xlu0 5
    %112 = vperm.xlu0 %111, %v43
    %v113 = vpop.permute.xlu0 %112
    %v115 = vperm.slane %v81, 2
    %v116 = vmul.f32 %v109, %v115
    %v117 = vmul.f32 %v113, %v115
    %v118 = vadd.f32 %v105, %v116
    %v119 = vadd.f32 %v106, %v117
    %120 = vset.pattern.permute.xlu0 6
    %121 = vperm.xlu0 %120, %v42
    %v122 = vpop.permute.xlu0 %121
    %124 = vset.pattern.permute.xlu0 6
    %125 = vperm.xlu0 %124, %v43
    %v126 = vpop.permute.xlu0 %125
    %v128 = vperm.slane %v81, 3
    %v129 = vmul.f32 %v122, %v128
    %v130 = vmul.f32 %v126, %v128
    %v131 = vadd.f32 %v118, %v129
    %v132 = vadd.f32 %v119, %v130
    %133 = vset.pattern.permute.xlu0 7
    %134 = vperm.xlu0 %133, %v42
    %v135 = vpop.permute.xlu0 %134
    %137 = vset.pattern.permute.xlu0 7
    %138 = vperm.xlu0 %137, %v43
    %v139 = vpop.permute.xlu0 %138
    %v141 = vperm.slane %v81, 4
    %v142 = vmul.f32 %v135, %v141
    %v143 = vmul.f32 %v139, %v141
    %v144 = vadd.f32 %v131, %v142
    %v145 = vadd.f32 %v132, %v143
    %146 = vset.pattern.permute.xlu0 8
    %147 = vperm.xlu0 %146, %v42
    %v148 = vpop.permute.xlu0 %147
    %150 = vset.pattern.permute.xlu0 8
    %151 = vperm.xlu0 %150, %v43
    %v152 = vpop.permute.xlu0 %151
    %v154 = vperm.slane %v81, 5
    %v155 = vmul.f32 %v148, %v154
    %v156 = vmul.f32 %v152, %v154
    %v157 = vadd.f32 %v144, %v155
    %v158 = vadd.f32 %v145, %v156
    %159 = vset.pattern.permute.xlu0 9
    %160 = vperm.xlu0 %159, %v42
    %v161 = vpop.permute.xlu0 %160
    %163 = vset.pattern.permute.xlu0 9
    %164 = vperm.xlu0 %163, %v43
    %v165 = vpop.permute.xlu0 %164
    %v167 = vperm.slane %v81, 6
    %v168 = vmul.f32 %v161, %v167
    %v169 = vmul.f32 %v165, %v167
    %v170 = vadd.f32 %v157, %v168
    %v171 = vadd.f32 %v158, %v169
    %172 = vset.pattern.permute.xlu0 10
    %173 = vperm.xlu0 %172, %v42
    %v174 = vpop.permute.xlu0 %173
    %176 = vset.pattern.permute.xlu0 10
    %177 = vperm.xlu0 %176, %v43
    %v178 = vpop.permute.xlu0 %177
    %v180 = vperm.slane %v81, 7
    %v181 = vmul.f32 %v174, %v180
    %v182 = vmul.f32 %v178, %v180
    %v183 = vadd.f32 %v170, %v181
    %v184 = vadd.f32 %v171, %v182
    %185 = vset.pattern.permute.xlu0 11
    %186 = vperm.xlu0 %185, %v42
    %v187 = vpop.permute.xlu0 %186
    %189 = vset.pattern.permute.xlu0 11
    %190 = vperm.xlu0 %189, %v43
    %v191 = vpop.permute.xlu0 %190
    %v193 = vperm.slane %v82, 0
    %v194 = vmul.f32 %v187, %v193
    %v195 = vmul.f32 %v191, %v193
    %v196 = vadd.f32 %v183, %v194
    %v197 = vadd.f32 %v184, %v195
    %198 = vset.pattern.permute.xlu0 12
    %199 = vperm.xlu0 %198, %v42
    %v200 = vpop.permute.xlu0 %199
    %202 = vset.pattern.permute.xlu0 12
    %203 = vperm.xlu0 %202, %v43
    %v204 = vpop.permute.xlu0 %203
    %v206 = vperm.slane %v82, 1
    %v207 = vmul.f32 %v200, %v206
    %v208 = vmul.f32 %v204, %v206
    %v209 = vadd.f32 %v196, %v207
    %v210 = vadd.f32 %v197, %v208
    %211 = vset.pattern.permute.xlu0 13
    %212 = vperm.xlu0 %211, %v42
    %v213 = vpop.permute.xlu0 %212
    %215 = vset.pattern.permute.xlu0 13
    %216 = vperm.xlu0 %215, %v43
    %v217 = vpop.permute.xlu0 %216
    %v219 = vadd.f32 %v209, %v213
    %v220 = vadd.f32 %v210, %v217
    %v221 = vmax.f32 %v219, 0.0
    %v222 = vmax.f32 %v220, 0.0
    %223 = vset.pattern.permute.xlu0 14
    %224 = vperm.xlu0 %223, %v42
    %v225 = vpop.permute.xlu0 %224
    %227 = vset.pattern.permute.xlu0 14
    %228 = vperm.xlu0 %227, %v43
    %v229 = vpop.permute.xlu0 %228
    %v231 = vmul.f32 %v225, %v221
    %v232 = vmul.f32 %v229, %v222
    %vm233 = vcmask 1041408
    %v234 = vsel %vm233, %v232, 0.0
    %v235 = vadd.f32 %v231, %v234
    %v236 = vrot.slane %v235, 4
    %v237 = vadd.f32 %v235, %v236
    %v238 = vrot.slane %v237, 2
    %v239 = vadd.f32 %v237, %v238
    %v240 = vrot.slane %v239, 1
    %v241 = vadd.f32 %v239, %v240
    %242 = vset.pattern.permute.xlu0 15
    %243 = vperm.xlu0 %242, %v42
    %v244 = vpop.permute.xlu0 %243
    %v246 = vadd.f32 %v241, %v244
    %247 = vst [vmem:[#allocation7] sm:$0x1] %v246
    // Predicated region
    $region18: #{tpu_custom_call.1} parent=1 // pred_check
      _
    $region19: #{tpu_custom_call.1} parent=1 // pred_check_branch
      %249 = sbr.rel (0) target = $region21
    $region20: #{tpu_custom_call.1} parent=1 // pred_region
      %251 = vsyncadd [#allocation4], 0
      %s253 = sshll.u32 [#allocation7], 4
      %s254 = int_to_ptr.vmem [resolvable:$true] %s253
      %s255 = sshll.u32 %s2, 4
      %s256 = int_to_ptr.hbm [resolvable:$true] %s255
      %258 = dma.vmem_to_hbm [thread:$0]  %s254, 16, %s256, [#allocation4]
    $region21: #{tpu_custom_call.1} parent=1 // pred_fallthru
      _
    // Predicated region
    $region22: #{tpu_custom_call.1} parent=1 // pred_check
      _
    $region23: #{tpu_custom_call.1} parent=1 // pred_check_branch
      %260 = sbr.rel (0) target = $region25
    $region24: #{tpu_custom_call.1} parent=1 // pred_region
      %262 = dma.done [#allocation4], 16
    $region25: #{tpu_custom_call.1} parent=1 // pred_fallthru
      _
    %263 = vsyncpa [#allocation3], 1
    %264 = vsyncpa [#allocation6], 1
    %265 = vsyncpa [#allocation4], 1

</llo_original>
